<compile_context>
chip_gen: v6e
topology: v6e:2x2x1
jax: 0.10.0
libtpu: 0.0.40
codegen_flags: <defaults>
</compile_context>

<pallas_src>
import functools

import jax
import jax.numpy as jnp
from jax.experimental import pallas as pl
from jax.experimental.pallas import tpu as pltpu

OUT_LANES = 128  # lane-dense output slab width


def _round_up(n, m):
    return ((n + m - 1) // m) * m


def ppo2_kernel(use_act_ref,                                   # scalar prefetch (SMEM)
                x_ref, w1_ref, b1_ref, w2_ref, b2_ref, w3_ref, b3_ref,
                wpv_ref, bpv_ref, act_in_ref, g_ref,           # VMEM inputs
                out_ref,                                       # [TB, 128] f32 slab
                act_sc,                                        # VMEM scratch [TB, 1] i32
                *, action_space):
    A = action_space
    f32 = jnp.float32
    bf16 = jnp.bfloat16

    # ---- MLP trunk: Linear -> (Dropout = identity) -> Tanh, x3 ----
    # bf16 matmul operands, f32 accumulate, f32 tanh.
    x = x_ref[...].astype(bf16)
    h = jnp.tanh(jnp.dot(x, w1_ref[...], preferred_element_type=f32) + b1_ref[...])
    h = jnp.tanh(jnp.dot(h.astype(bf16), w2_ref[...],
                         preferred_element_type=f32) + b2_ref[...])
    h = jnp.tanh(jnp.dot(h.astype(bf16), w3_ref[...],
                         preferred_element_type=f32) + b3_ref[...])

    # ---- fused policy + value heads: single [H, A+1] matmul ----
    head = jnp.dot(h.astype(bf16), wpv_ref[...],
                   preferred_element_type=f32) + bpv_ref[...]   # [TB, A+1]
    logits = head[:, :A]                                        # [TB, A]
    value = head[:, A:A + 1]                                    # [TB, 1]

    TB = logits.shape[0]
    ids = jax.lax.broadcasted_iota(jnp.int32, (TB, A), 1)       # hoisted, reused twice

    # ---- numerically-stable log-sum-exp / softmax stats ----
    m = jnp.max(logits, axis=-1, keepdims=True)
    lse = m + jnp.log(jnp.sum(jnp.exp(logits - m), axis=-1, keepdims=True))
    probs = jnp.exp(logits - lse)

    use_given = use_act_ref[0] != 0

    @pl.when(use_given)
    def _():
        # training path: just take the provided action; no sampling work.
        act_sc[...] = act_in_ref[...]

    @pl.when(jnp.logical_not(use_given))
    def _():
        # Gumbel-max sampling (noise precomputed host-side, ties -> lowest index).
        perturbed = logits + g_ref[...]
        pmax = jnp.max(perturbed, axis=-1, keepdims=True)
        act_sc[...] = jnp.min(jnp.where(perturbed == pmax, ids, A),
                              axis=-1, keepdims=True)

    action = act_sc[...]                                        # [TB, 1] int32

    # ---- log_prob(action) and entropy ----
    sel_logit = jnp.sum(jnp.where(ids == action, logits, 0.0),
                        axis=-1, keepdims=True)                 # [TB, 1]
    nlp = lse - sel_logit
    ent = lse - jnp.sum(probs * logits, axis=-1, keepdims=True)

    # ---- pack everything into one lane-dense [TB, 128] store ----
    lane = jax.lax.broadcasted_iota(jnp.int32, (TB, OUT_LANES), 1)
    slab = (jnp.where(lane == 0, value, 0.0)
            + jnp.where(lane == 1, nlp, 0.0)
            + jnp.where(lane == 2, ent, 0.0)
            + jnp.where(lane == 3, action.astype(f32), 0.0))    # exact: A << 2^24
    out_ref[...] = slab


def ppo2_forward(params, x, action=None, seed=0, batch_tile=256):
    """Returns (value_f [B,1] f32, action [B] i32, neg_log_prob [B], entropy [B])."""
    x = jnp.asarray(x, jnp.float32)
    B, input_dim = x.shape
    H = params["b1"].shape[-1]
    A = params["bp"].shape[-1]

    HP = _round_up(H, 128)                       # lane-full hidden width
    TB = min(batch_tile, _round_up(B, 8))        # batch tile (sublane multiple)
    Bp = _round_up(B, TB)

    bf16 = jnp.bfloat16

    def pad2(a, shape):
        return jnp.zeros(shape, a.dtype).at[:a.shape[0], :a.shape[1]].set(a)

    # zero-pad hidden width to 128 lanes (exact), weights in bf16, biases f32.
    w1 = pad2(params["w1"].astype(bf16), (input_dim, HP))
    w2 = pad2(params["w2"].astype(bf16), (HP, HP))
    w3 = pad2(params["w3"].astype(bf16), (HP, HP))
    b1 = pad2(params["b1"].astype(jnp.float32), (1, HP))
    b2 = pad2(params["b2"].astype(jnp.float32), (1, HP))
    b3 = pad2(params["b3"].astype(jnp.float32), (1, HP))
    wpv = pad2(jnp.concatenate([params["wp"], params["wv"]], axis=1).astype(bf16),
               (HP, A + 1))                      # fused policy|value head weight
    bpv = jnp.concatenate([params["bp"], params["bv"]], axis=1).astype(jnp.float32)

    xp = jnp.zeros((Bp, input_dim), jnp.float32).at[:B].set(x)
    if action is None:
        act_in = jnp.zeros((Bp, 1), jnp.int32)
        use_act = jnp.zeros((1,), jnp.int32)
        g = jax.random.gumbel(jax.random.PRNGKey(seed), (Bp, A), jnp.float32)
    else:
        act_in = jnp.zeros((Bp, 1), jnp.int32).at[:B, 0].set(
            jnp.asarray(action, jnp.int32).reshape(B))
        use_act = jnp.ones((1,), jnp.int32)
        g = jnp.zeros((Bp, A), jnp.float32)      # unused (sampling block gated off)

    kernel = functools.partial(ppo2_kernel, action_space=A)

    slab = pl.pallas_call(
        kernel,
        out_shape=jax.ShapeDtypeStruct((Bp, OUT_LANES), jnp.float32),
        grid_spec=pltpu.PrefetchScalarGridSpec(
            num_scalar_prefetch=1,
            grid=(Bp // TB,),
            in_specs=[
                pl.BlockSpec((TB, input_dim), lambda i, ua: (i, 0)),   # x
                pl.BlockSpec((input_dim, HP), lambda i, ua: (0, 0)),   # w1
                pl.BlockSpec((1, HP),         lambda i, ua: (0, 0)),   # b1
                pl.BlockSpec((HP, HP),        lambda i, ua: (0, 0)),   # w2
                pl.BlockSpec((1, HP),         lambda i, ua: (0, 0)),   # b2
                pl.BlockSpec((HP, HP),        lambda i, ua: (0, 0)),   # w3
                pl.BlockSpec((1, HP),         lambda i, ua: (0, 0)),   # b3
                pl.BlockSpec((HP, A + 1),     lambda i, ua: (0, 0)),   # wpv (fused)
                pl.BlockSpec((1, A + 1),      lambda i, ua: (0, 0)),   # bpv (fused)
                pl.BlockSpec((TB, 1),         lambda i, ua: (i, 0)),   # act_in
                pl.BlockSpec((TB, A),         lambda i, ua: (i, 0)),   # gumbel noise
            ],
            out_specs=pl.BlockSpec((TB, OUT_LANES), lambda i, ua: (i, 0)),
            scratch_shapes=[pltpu.VMEM((TB, 1), jnp.int32)],
        ),
        compiler_params=pltpu.CompilerParams(
            dimension_semantics=("parallel",)),
    )(use_act, xp, w1, b1, w2, b2, w3, b3, wpv, bpv, act_in, g)

    value_f = slab[:B, 0:1]
    nlp = slab[:B, 1]
    ent = slab[:B, 2]
    act = slab[:B, 3].astype(jnp.int32)
    return value_f, act, nlp, ent


def init_ppo2_params(key, input_dim, hidden_dim, action_space):
    """Orthogonal(gain=sqrt(2)) weights, zero biases — mirrors PPO2.__init__."""
    ortho = jax.nn.initializers.orthogonal(scale=2 ** 0.5)
    ks = jax.random.split(key, 5)
    # PyTorch Linear weight is [out, in]; store the transpose [in, out].
    w1 = ortho(ks[0], (hidden_dim, input_dim), jnp.float32).T
    w2 = ortho(ks[1], (hidden_dim, hidden_dim), jnp.float32).T
    w3 = ortho(ks[2], (hidden_dim, hidden_dim), jnp.float32).T
    wp = ortho(ks[3], (action_space, hidden_dim), jnp.float32).T
    wv = ortho(ks[4], (1, hidden_dim), jnp.float32).T
    return {
        "w1": w1, "b1": jnp.zeros((1, hidden_dim), jnp.float32),
        "w2": w2, "b2": jnp.zeros((1, hidden_dim), jnp.float32),
        "w3": w3, "b3": jnp.zeros((1, hidden_dim), jnp.float32),
        "wp": wp, "bp": jnp.zeros((1, action_space), jnp.float32),
        "wv": wv, "bv": jnp.zeros((1, 1), jnp.float32),
    }


def ref_forward(params, x, action):
    """Pure-JAX reference using the same bf16 matmul operands as the kernel."""
    bf16, f32 = jnp.bfloat16, jnp.float32

    def dotf(a, w):
        return jnp.dot(a.astype(bf16), w.astype(bf16), preferred_element_type=f32)

    h = jnp.tanh(dotf(x, params["w1"]) + params["b1"])
    h = jnp.tanh(dotf(h, params["w2"]) + params["b2"])
    h = jnp.tanh(dotf(h, params["w3"]) + params["b3"])
    logits = dotf(h, params["wp"]) + params["bp"]
    value = dotf(h, params["wv"]) + params["bv"]
    m = jnp.max(logits, -1, keepdims=True)
    lse = m + jnp.log(jnp.sum(jnp.exp(logits - m), -1, keepdims=True))
    probs = jnp.exp(logits - lse)
    action = jnp.asarray(action, jnp.int32)
    sel = jnp.take_along_axis(logits, action[:, None], axis=-1)
    nlp = (lse - sel)[:, 0]
    ent = (lse - jnp.sum(probs * logits, -1, keepdims=True))[:, 0]
    return value, nlp, ent


if __name__ == "__main__":
    INPUT_DIM, HIDDEN_DIM, ACTION_SPACE, DROPOUT = 32, 32, 8, 0.1  # dropout: identity at inference
    BATCH = 8

    key = jax.random.PRNGKey(0)
    k_param, k_x = jax.random.split(key)
    params = init_ppo2_params(k_param, INPUT_DIM, HIDDEN_DIM, ACTION_SPACE)
    x = jax.random.normal(k_x, (BATCH, INPUT_DIM), jnp.float32)

    # action=None path: kernel samples from Categorical(logits) via Gumbel-max.
    value_f, action, neg_log_prob, entropy = ppo2_forward(params, x, action=None, seed=1234)
    jax.block_until_ready((value_f, action, neg_log_prob, entropy))

    # action-given path: neg-log-likelihood of the sampled actions (sampling gated off).
    value_f2, action2, neg_log_prob2, entropy2 = ppo2_forward(params, x, action=action, seed=0)
    jax.block_until_ready((value_f2, action2, neg_log_prob2, entropy2))

    assert value_f.shape == (BATCH, 1)
    assert action.shape == (BATCH,)
    assert neg_log_prob.shape == (BATCH,)
    assert entropy.shape == (BATCH,)
    assert bool(jnp.all((action >= 0) & (action < ACTION_SPACE)))
    assert bool(jnp.all(action2 == action))
    assert bool(jnp.all(neg_log_prob >= -1e-5))

    # numeric check vs pure-JAX reference (same action -> same nlp/entropy/value)
    rv, rnlp, rent = ref_forward(params, x, action)
    assert bool(jnp.allclose(value_f2, rv, atol=5e-3, rtol=5e-3))
    assert bool(jnp.allclose(neg_log_prob2, rnlp, atol=5e-3, rtol=5e-3))
    assert bool(jnp.allclose(entropy2, rent, atol=5e-3, rtol=5e-3))

    print("KERNEL_OK")
</pallas_src>

<mosaic_0001>
module attributes {stable_mosaic.version = 11 : i64} {
  func.func @ppo2_kernel(%arg0: i32, %arg1: memref<1xi32, #tpu.memory_space<smem>>, %arg2: memref<8x32xf32, #tpu.memory_space<vmem>>, %arg3: memref<32x128xbf16, #tpu.memory_space<vmem>>, %arg4: memref<1x128xf32, #tpu.memory_space<vmem>>, %arg5: memref<128x128xbf16, #tpu.memory_space<vmem>>, %arg6: memref<1x128xf32, #tpu.memory_space<vmem>>, %arg7: memref<128x128xbf16, #tpu.memory_space<vmem>>, %arg8: memref<1x128xf32, #tpu.memory_space<vmem>>, %arg9: memref<128x9xbf16, #tpu.memory_space<vmem>>, %arg10: memref<1x9xf32, #tpu.memory_space<vmem>>, %arg11: memref<8x1xi32, #tpu.memory_space<vmem>>, %arg12: memref<8x8xf32, #tpu.memory_space<vmem>>, %arg13: memref<8x128xf32, #tpu.memory_space<vmem>>, %arg14: memref<8x1xi32, #tpu.memory_space<vmem>>) attributes {dimension_semantics = [#tpu.dimension_semantics<parallel>], iteration_bounds = array<i64: 1>, scalar_prefetch = 1 : i64, scratch_operands = 1 : i64, tpu.core_type = #tpu.core_type<tc>, window_params = [{transform_indices = @transform_0, window_bounds = array<i64: 8, 32>}, {pipeline_mode = #tpu.pipeline_mode<synchronous>, transform_indices = @transform_1, window_bounds = array<i64: 32, 128>}, {pipeline_mode = #tpu.pipeline_mode<synchronous>, transform_indices = @transform_2, window_bounds = array<i64: 1, 128>}, {pipeline_mode = #tpu.pipeline_mode<synchronous>, transform_indices = @transform_3, window_bounds = array<i64: 128, 128>}, {pipeline_mode = #tpu.pipeline_mode<synchronous>, transform_indices = @transform_4, window_bounds = array<i64: 1, 128>}, {pipeline_mode = #tpu.pipeline_mode<synchronous>, transform_indices = @transform_5, window_bounds = array<i64: 128, 128>}, {pipeline_mode = #tpu.pipeline_mode<synchronous>, transform_indices = @transform_6, window_bounds = array<i64: 1, 128>}, {pipeline_mode = #tpu.pipeline_mode<synchronous>, transform_indices = @transform_7, window_bounds = array<i64: 128, 9>}, {pipeline_mode = #tpu.pipeline_mode<synchronous>, transform_indices = @transform_8, window_bounds = array<i64: 1, 9>}, {transform_indices = @transform_9, window_bounds = array<i64: 8, 1>}, {transform_indices = @transform_10, window_bounds = array<i64: 8, 8>}, {transform_indices = @transform_11, window_bounds = array<i64: 8, 128>}]} {
    %c0 = arith.constant 0 : index
    %c0_0 = arith.constant 0 : index
    %0 = vector.load %arg2[%c0, %c0_0] : memref<8x32xf32, #tpu.memory_space<vmem>>, vector<8x32xf32>
    %1 = arith.truncf %0 : vector<8x32xf32> to vector<8x32xbf16>
    %c0_1 = arith.constant 0 : index
    %c0_2 = arith.constant 0 : index
    %2 = vector.load %arg3[%c0_1, %c0_2] : memref<32x128xbf16, #tpu.memory_space<vmem>>, vector<32x128xbf16>
    %cst = arith.constant dense<0.000000e+00> : vector<8x128xf32>
    %3 = tpu.matmul %1, %2, %cst {dimension_numbers = #tpu.dot_dimension_numbers<[1], [0], [0], [1], [0, 0, 1, 1], [], []>} : vector<8x32xbf16>, vector<32x128xbf16>, vector<8x128xf32> -> vector<8x128xf32>
    %c0_3 = arith.constant 0 : index
    %c0_4 = arith.constant 0 : index
    %4 = vector.load %arg4[%c0_3, %c0_4] : memref<1x128xf32, #tpu.memory_space<vmem>>, vector<1x128xf32>
    %5 = vector.broadcast %4 : vector<1x128xf32> to vector<8x128xf32>
    %6 = arith.addf %3, %5 : vector<8x128xf32>
    %7 = math.tanh %6 : vector<8x128xf32>
    %8 = arith.truncf %7 : vector<8x128xf32> to vector<8x128xbf16>
    %c0_5 = arith.constant 0 : index
    %c0_6 = arith.constant 0 : index
    %9 = vector.load %arg5[%c0_5, %c0_6] : memref<128x128xbf16, #tpu.memory_space<vmem>>, vector<128x128xbf16>
    %cst_7 = arith.constant dense<0.000000e+00> : vector<8x128xf32>
    %10 = tpu.matmul %8, %9, %cst_7 {dimension_numbers = #tpu.dot_dimension_numbers<[1], [0], [0], [1], [0, 0, 1, 1], [], []>} : vector<8x128xbf16>, vector<128x128xbf16>, vector<8x128xf32> -> vector<8x128xf32>
    %c0_8 = arith.constant 0 : index
    %c0_9 = arith.constant 0 : index
    %11 = vector.load %arg6[%c0_8, %c0_9] : memref<1x128xf32, #tpu.memory_space<vmem>>, vector<1x128xf32>
    %12 = vector.broadcast %11 : vector<1x128xf32> to vector<8x128xf32>
    %13 = arith.addf %10, %12 : vector<8x128xf32>
    %14 = math.tanh %13 : vector<8x128xf32>
    %15 = arith.truncf %14 : vector<8x128xf32> to vector<8x128xbf16>
    %c0_10 = arith.constant 0 : index
    %c0_11 = arith.constant 0 : index
    %16 = vector.load %arg7[%c0_10, %c0_11] : memref<128x128xbf16, #tpu.memory_space<vmem>>, vector<128x128xbf16>
    %cst_12 = arith.constant dense<0.000000e+00> : vector<8x128xf32>
    %17 = tpu.matmul %15, %16, %cst_12 {dimension_numbers = #tpu.dot_dimension_numbers<[1], [0], [0], [1], [0, 0, 1, 1], [], []>} : vector<8x128xbf16>, vector<128x128xbf16>, vector<8x128xf32> -> vector<8x128xf32>
    %c0_13 = arith.constant 0 : index
    %c0_14 = arith.constant 0 : index
    %18 = vector.load %arg8[%c0_13, %c0_14] : memref<1x128xf32, #tpu.memory_space<vmem>>, vector<1x128xf32>
    %19 = vector.broadcast %18 : vector<1x128xf32> to vector<8x128xf32>
    %20 = arith.addf %17, %19 : vector<8x128xf32>
    %21 = math.tanh %20 : vector<8x128xf32>
    %22 = arith.truncf %21 : vector<8x128xf32> to vector<8x128xbf16>
    %c0_15 = arith.constant 0 : index
    %c0_16 = arith.constant 0 : index
    %23 = vector.load %arg9[%c0_15, %c0_16] : memref<128x9xbf16, #tpu.memory_space<vmem>>, vector<128x9xbf16>
    %cst_17 = arith.constant dense<0.000000e+00> : vector<8x9xf32>
    %24 = tpu.matmul %22, %23, %cst_17 {dimension_numbers = #tpu.dot_dimension_numbers<[1], [0], [0], [1], [0, 0, 1, 1], [], []>} : vector<8x128xbf16>, vector<128x9xbf16>, vector<8x9xf32> -> vector<8x9xf32>
    %c0_18 = arith.constant 0 : index
    %c0_19 = arith.constant 0 : index
    %25 = vector.load %arg10[%c0_18, %c0_19] : memref<1x9xf32, #tpu.memory_space<vmem>>, vector<1x9xf32>
    %26 = vector.broadcast %25 : vector<1x9xf32> to vector<8x9xf32>
    %27 = arith.addf %24, %26 : vector<8x9xf32>
    %28 = vector.extract_strided_slice %27 {offsets = [0, 0], sizes = [8, 8], strides = [1, 1]} : vector<8x9xf32> to vector<8x8xf32>
    %29 = vector.extract_strided_slice %27 {offsets = [0, 8], sizes = [8, 1], strides = [1, 1]} : vector<8x9xf32> to vector<8x1xf32>
    %30 = tpu.iota {dimensions = array<i32: 1>} : vector<8x8xi32>
    %cst_20 = arith.constant dense<0xFF800000> : vector<8xf32>
    %31 = vector.multi_reduction <maximumf>, %28, %cst_20 [1] : vector<8x8xf32> to vector<8xf32>
    %32 = vector.shape_cast %31 : vector<8xf32> to vector<8x1xf32>
    %33 = vector.broadcast %32 : vector<8x1xf32> to vector<8x8xf32>
    %34 = arith.subf %28, %33 : vector<8x8xf32>
    %35 = math.exp %34 : vector<8x8xf32>
    %cst_21 = arith.constant dense<0.000000e+00> : vector<8xf32>
    %36 = vector.multi_reduction <add>, %35, %cst_21 [1] : vector<8x8xf32> to vector<8xf32>
    %37 = vector.shape_cast %36 : vector<8xf32> to vector<8x1xf32>
    %38 = math.log %37 : vector<8x1xf32>
    %39 = arith.addf %32, %38 : vector<8x1xf32>
    %40 = vector.broadcast %39 : vector<8x1xf32> to vector<8x8xf32>
    %41 = arith.subf %28, %40 : vector<8x8xf32>
    %42 = math.exp %41 : vector<8x8xf32>
    %c0_22 = arith.constant 0 : index
    %43 = memref.load %arg1[%c0_22] : memref<1xi32, #tpu.memory_space<smem>>
    %c0_i32 = arith.constant 0 : i32
    %44 = arith.cmpi ne, %43, %c0_i32 : i32
    %45 = arith.extui %44 : i1 to i32
    %c0_i32_23 = arith.constant 0 : i32
    %46 = arith.cmpi ne, %45, %c0_i32_23 : i32
    scf.if %46 {
      %c0_37 = arith.constant 0 : index
      %c0_38 = arith.constant 0 : index
      %92 = vector.load %arg11[%c0_37, %c0_38] : memref<8x1xi32, #tpu.memory_space<vmem>>, vector<8x1xi32>
      %c0_39 = arith.constant 0 : index
      %c0_40 = arith.constant 0 : index
      %93 = vector.load %arg14[%c0_39, %c0_40] : memref<8x1xi32, #tpu.memory_space<vmem>>, vector<8x1xi32>
      tpu.vector_store %arg14[%c0_39, %c0_40], %92 {strides = array<i32>} : memref<8x1xi32, #tpu.memory_space<vmem>>, vector<8x1xi32>,
    } else {
    }
    %true = arith.constant true
    %47 = arith.xori %44, %true : i1
    %48 = arith.extui %47 : i1 to i32
    %c0_i32_24 = arith.constant 0 : i32
    %49 = arith.cmpi ne, %48, %c0_i32_24 : i32
    scf.if %49 {
      %c0_37 = arith.constant 0 : index
      %c0_38 = arith.constant 0 : index
      %92 = vector.load %arg12[%c0_37, %c0_38] : memref<8x8xf32, #tpu.memory_space<vmem>>, vector<8x8xf32>
      %93 = arith.addf %28, %92 : vector<8x8xf32>
      %cst_39 = arith.constant dense<0xFF800000> : vector<8xf32>
      %94 = vector.multi_reduction <maximumf>, %93, %cst_39 [1] : vector<8x8xf32> to vector<8xf32>
      %95 = vector.shape_cast %94 : vector<8xf32> to vector<8x1xf32>
      %96 = vector.broadcast %95 : vector<8x1xf32> to vector<8x8xf32>
      %97 = arith.cmpf oeq, %93, %96 : vector<8x8xf32>
      %c8_i32 = arith.constant 8 : i32
      %98 = vector.broadcast %c8_i32 : i32 to vector<8x8xi32>
      %99 = arith.select %97, %30, %98 : vector<8x8xi1>, vector<8x8xi32>
      %cst_40 = arith.constant dense<2147483647> : vector<8xi32>
      %100 = vector.multi_reduction <minsi>, %99, %cst_40 [1] : vector<8x8xi32> to vector<8xi32>
      %101 = vector.shape_cast %100 : vector<8xi32> to vector<8x1xi32>
      %c0_41 = arith.constant 0 : index
      %c0_42 = arith.constant 0 : index
      %102 = vector.load %arg14[%c0_41, %c0_42] : memref<8x1xi32, #tpu.memory_space<vmem>>, vector<8x1xi32>
      tpu.vector_store %arg14[%c0_41, %c0_42], %101 {strides = array<i32>} : memref<8x1xi32, #tpu.memory_space<vmem>>, vector<8x1xi32>,
    } else {
    }
    %c0_25 = arith.constant 0 : index
    %c0_26 = arith.constant 0 : index
    %50 = vector.load %arg14[%c0_25, %c0_26] : memref<8x1xi32, #tpu.memory_space<vmem>>, vector<8x1xi32>
    %51 = vector.broadcast %50 : vector<8x1xi32> to vector<8x8xi32>
    %52 = arith.cmpi eq, %30, %51 : vector<8x8xi32>
    %cst_27 = arith.constant 0.000000e+00 : f32
    %53 = vector.broadcast %cst_27 : f32 to vector<8x8xf32>
    %54 = arith.select %52, %28, %53 : vector<8x8xi1>, vector<8x8xf32>
    %cst_28 = arith.constant dense<0.000000e+00> : vector<8xf32>
    %55 = vector.multi_reduction <add>, %54, %cst_28 [1] : vector<8x8xf32> to vector<8xf32>
    %56 = vector.shape_cast %55 : vector<8xf32> to vector<8x1xf32>
    %57 = arith.subf %39, %56 : vector<8x1xf32>
    %58 = arith.mulf %42, %28 : vector<8x8xf32>
    %cst_29 = arith.constant dense<0.000000e+00> : vector<8xf32>
    %59 = vector.multi_reduction <add>, %58, %cst_29 [1] : vector<8x8xf32> to vector<8xf32>
    %60 = vector.shape_cast %59 : vector<8xf32> to vector<8x1xf32>
    %61 = arith.subf %39, %60 : vector<8x1xf32>
    %62 = tpu.iota {dimensions = array<i32: 1>} : vector<8x128xi32>
    %c0_i32_30 = arith.constant 0 : i32
    %63 = vector.broadcast %c0_i32_30 : i32 to vector<8x128xi32>
    %64 = arith.cmpi eq, %62, %63 : vector<8x128xi32>
    %cst_31 = arith.constant 0.000000e+00 : f32
    %65 = vector.shape_cast %29 : vector<8x1xf32> to vector<8x1xf32>
    %66 = vector.broadcast %65 : vector<8x1xf32> to vector<8x128xf32>
    %67 = vector.broadcast %cst_31 : f32 to vector<8x128xf32>
    %68 = arith.select %64, %66, %67 : vector<8x128xi1>, vector<8x128xf32>
    %c1_i32 = arith.constant 1 : i32
    %69 = vector.broadcast %c1_i32 : i32 to vector<8x128xi32>
    %70 = arith.cmpi eq, %62, %69 : vector<8x128xi32>
    %cst_32 = arith.constant 0.000000e+00 : f32
    %71 = vector.shape_cast %57 : vector<8x1xf32> to vector<8x1xf32>
    %72 = vector.broadcast %71 : vector<8x1xf32> to vector<8x128xf32>
    %73 = vector.broadcast %cst_32 : f32 to vector<8x128xf32>
    %74 = arith.select %70, %72, %73 : vector<8x128xi1>, vector<8x128xf32>
    %75 = arith.addf %68, %74 : vector<8x128xf32>
    %c2_i32 = arith.constant 2 : i32
    %76 = vector.broadcast %c2_i32 : i32 to vector<8x128xi32>
    %77 = arith.cmpi eq, %62, %76 : vector<8x128xi32>
    %cst_33 = arith.constant 0.000000e+00 : f32
    %78 = vector.shape_cast %61 : vector<8x1xf32> to vector<8x1xf32>
    %79 = vector.broadcast %78 : vector<8x1xf32> to vector<8x128xf32>
    %80 = vector.broadcast %cst_33 : f32 to vector<8x128xf32>
    %81 = arith.select %77, %79, %80 : vector<8x128xi1>, vector<8x128xf32>
    %82 = arith.addf %75, %81 : vector<8x128xf32>
    %c3_i32 = arith.constant 3 : i32
    %83 = vector.broadcast %c3_i32 : i32 to vector<8x128xi32>
    %84 = arith.cmpi eq, %62, %83 : vector<8x128xi32>
    %85 = arith.sitofp %50 : vector<8x1xi32> to vector<8x1xf32>
    %cst_34 = arith.constant 0.000000e+00 : f32
    %86 = vector.shape_cast %85 : vector<8x1xf32> to vector<8x1xf32>
    %87 = vector.broadcast %86 : vector<8x1xf32> to vector<8x128xf32>
    %88 = vector.broadcast %cst_34 : f32 to vector<8x128xf32>
    %89 = arith.select %84, %87, %88 : vector<8x128xi1>, vector<8x128xf32>
    %90 = arith.addf %82, %89 : vector<8x128xf32>
    %c0_35 = arith.constant 0 : index
    %c0_36 = arith.constant 0 : index
    %91 = vector.load %arg13[%c0_35, %c0_36] : memref<8x128xf32, #tpu.memory_space<vmem>>, vector<8x128xf32>
    tpu.vector_store %arg13[%c0_35, %c0_36], %90 {strides = array<i32>} : memref<8x128xf32, #tpu.memory_space<vmem>>, vector<8x128xf32>,
    return
  }
  func.func @transform_0(%arg0: i32, %arg1: memref<1xi32, #tpu.memory_space<smem>>) -> (i32, i32) {
    %c0_i32 = arith.constant 0 : i32
    %c0_i32_0 = arith.constant 0 : i32
    return %arg0, %c0_i32 : i32, i32
  }
  func.func @transform_1(%arg0: i32, %arg1: memref<1xi32, #tpu.memory_space<smem>>) -> (i32, i32) {
    %c0_i32 = arith.constant 0 : i32
    %c0_i32_0 = arith.constant 0 : i32
    %c0_i32_1 = arith.constant 0 : i32
    return %c0_i32, %c0_i32_0 : i32, i32
  }
  func.func @transform_2(%arg0: i32, %arg1: memref<1xi32, #tpu.memory_space<smem>>) -> (i32, i32) {
    %c0_i32 = arith.constant 0 : i32
    %c0_i32_0 = arith.constant 0 : i32
    %c0_i32_1 = arith.constant 0 : i32
    return %c0_i32, %c0_i32_0 : i32, i32
  }
  func.func @transform_3(%arg0: i32, %arg1: memref<1xi32, #tpu.memory_space<smem>>) -> (i32, i32) {
    %c0_i32 = arith.constant 0 : i32
    %c0_i32_0 = arith.constant 0 : i32
    %c0_i32_1 = arith.constant 0 : i32
    return %c0_i32, %c0_i32_0 : i32, i32
  }
  func.func @transform_4(%arg0: i32, %arg1: memref<1xi32, #tpu.memory_space<smem>>) -> (i32, i32) {
    %c0_i32 = arith.constant 0 : i32
    %c0_i32_0 = arith.constant 0 : i32
    %c0_i32_1 = arith.constant 0 : i32
    return %c0_i32, %c0_i32_0 : i32, i32
  }
  func.func @transform_5(%arg0: i32, %arg1: memref<1xi32, #tpu.memory_space<smem>>) -> (i32, i32) {
    %c0_i32 = arith.constant 0 : i32
    %c0_i32_0 = arith.constant 0 : i32
    %c0_i32_1 = arith.constant 0 : i32
    return %c0_i32, %c0_i32_0 : i32, i32
  }
  func.func @transform_6(%arg0: i32, %arg1: memref<1xi32, #tpu.memory_space<smem>>) -> (i32, i32) {
    %c0_i32 = arith.constant 0 : i32
    %c0_i32_0 = arith.constant 0 : i32
    %c0_i32_1 = arith.constant 0 : i32
    return %c0_i32, %c0_i32_0 : i32, i32
  }
  func.func @transform_7(%arg0: i32, %arg1: memref<1xi32, #tpu.memory_space<smem>>) -> (i32, i32) {
    %c0_i32 = arith.constant 0 : i32
    %c0_i32_0 = arith.constant 0 : i32
    %c0_i32_1 = arith.constant 0 : i32
    return %c0_i32, %c0_i32_0 : i32, i32
  }
  func.func @transform_8(%arg0: i32, %arg1: memref<1xi32, #tpu.memory_space<smem>>) -> (i32, i32) {
    %c0_i32 = arith.constant 0 : i32
    %c0_i32_0 = arith.constant 0 : i32
    %c0_i32_1 = arith.constant 0 : i32
    return %c0_i32, %c0_i32_0 : i32, i32
  }
  func.func @transform_9(%arg0: i32, %arg1: memref<1xi32, #tpu.memory_space<smem>>) -> (i32, i32) {
    %c0_i32 = arith.constant 0 : i32
    %c0_i32_0 = arith.constant 0 : i32
    return %arg0, %c0_i32 : i32, i32
  }
  func.func @transform_10(%arg0: i32, %arg1: memref<1xi32, #tpu.memory_space<smem>>) -> (i32, i32) {
    %c0_i32 = arith.constant 0 : i32
    %c0_i32_0 = arith.constant 0 : i32
    return %arg0, %c0_i32 : i32, i32
  }
  func.func @transform_11(%arg0: i32, %arg1: memref<1xi32, #tpu.memory_space<smem>>) -> (i32, i32) {
    %c0_i32 = arith.constant 0 : i32
    %c0_i32_0 = arith.constant 0 : i32
    return %arg0, %c0_i32 : i32, i32
  }
}

</mosaic_0001>

<llo_original>
// kernel: tpu_custom_call.1
$region0: #{tpu_custom_call.1}
  #allocation0 [shape = 'u32[]', space=smem, size = 0x4, offset = 0x4, fixed_abs, tag = 'smem constant byte address 0x4 - core index']
  #allocation1 [shape = 'u32[144,128]{1,0:T(1,128)}', space=vmem, size = 0x12000, scoped, tag = 'internal scratch']
  #allocation2 [shape = 's32[8,1]{1,0:T(8,128)}', space=vmem, size = 0x1000, scoped, tag = 'scratch operand']
  #allocation3 [shape = 's32[1]{0}', space=sflag, size = 0x4, scoped, tag = 'scoped memory for tpu_custom_call.1']
  #allocation4 [shape = 's32[1]{0:T(128)S(6)}', space=smem, size = 0x200, scoped, tag = 'prefetched SMEM operand 0']
  %s0 = inlined_call_operand.<no memory space> [shape: s32[1], index: 0, kind: input, shape index: {}]
  %s1 = inlined_call_operand.hbm [shape: f32[8,32], index: 1, kind: input, shape index: {}]
  %s2 = inlined_call_operand.vmem [shape: bf16[32,128], index: 2, kind: input, shape index: {}]
  %s3 = inlined_call_operand.hbm [shape: f32[1,128], index: 3, kind: input, shape index: {}]
  %s4 = inlined_call_operand.vmem [shape: bf16[128,128], index: 4, kind: input, shape index: {}]
  %s5 = inlined_call_operand.hbm [shape: f32[1,128], index: 5, kind: input, shape index: {}]
  %s6 = inlined_call_operand.hbm [shape: bf16[128,128], index: 6, kind: input, shape index: {}]
  %s7 = inlined_call_operand.hbm [shape: f32[1,128], index: 7, kind: input, shape index: {}]
  %s8 = inlined_call_operand.vmem [shape: bf16[128,9], index: 8, kind: input, shape index: {}]
  %s9 = inlined_call_operand.hbm [shape: f32[1,9], index: 9, kind: input, shape index: {}]
  %s10 = inlined_call_operand.vmem [shape: s32[8,1], index: 10, kind: input, shape index: {}]
  %s11 = inlined_call_operand.vmem [shape: f32[8,8], index: 11, kind: input, shape index: {}]
  %s12 = inlined_call_operand.hbm [shape: f32[8,128], index: 12, kind: output, shape index: {}]
  %s13 = sld [smem:[#allocation0]]
  $region86: #{tpu_custom_call.1} parent=0
    _
  %s15 = ssub.s32 1, %s13
  %s16 = scalar_select 0, %s15, %s13
  %17 = sst [smem:[#allocation4]] %s0
  $region1: #{tpu_custom_call.1} parent=0
    #allocation5 [shape = 'u8[4096]{0}', space=vmem, size = 0x1000, scoped, tag = 'input window, operand 1, single buffered']
    #allocation6 [shape = 's32[1]{0}', space=sflag, size = 0x4, scoped, tag = 'scoped memory for tpu_custom_call.1']
    #allocation7 [shape = 's32[1]{0}', space=sflag, size = 0x4, scoped, tag = 'scoped memory for tpu_custom_call.1']
    #allocation8 [shape = 'u8[512]{0}', space=vmem, size = 0x400, scoped, tag = 'input window, operand 3, single buffered']
    #allocation9 [shape = 's32[1]{0}', space=sflag, size = 0x4, scoped, tag = 'scoped memory for tpu_custom_call.1']
    #allocation10 [shape = 'u8[512]{0}', space=vmem, size = 0x400, scoped, tag = 'input window, operand 5, single buffered']
    #allocation11 [shape = 'u8[32768]{0}', space=vmem, size = 0x8000, scoped, tag = 'input window, operand 6, single buffered']
    #allocation12 [shape = 's32[1]{0}', space=sflag, size = 0x4, scoped, tag = 'scoped memory for tpu_custom_call.1']
    #allocation13 [shape = 'u8[512]{0}', space=vmem, size = 0x400, scoped, tag = 'input window, operand 7, single buffered']
    #allocation14 [shape = 'u8[512]{0}', space=vmem, size = 0x400, scoped, tag = 'input window, operand 9, single buffered']
    #allocation15 [shape = 's32[1]{0}', space=sflag, size = 0x4, scoped, tag = 'scoped memory for tpu_custom_call.1']
    #allocation16 [shape = 'u8[4096]{0}', space=vmem, size = 0x1000, scoped, tag = 'output window, operand 0, single buffered']
    %18 = vsyncpa [#allocation6], 0
    %19 = vsyncpa [#allocation9], 0
    %20 = vsyncpa [#allocation12], 0
    %21 = vsyncpa [#allocation15], 0
    %22 = vsyncpa [#allocation7], 0
    // Predicated region
    $region2: #{tpu_custom_call.1} parent=1 // pred_check
      _
    $region3: #{tpu_custom_call.1} parent=1 // pred_check_branch
      %24 = sbr.rel (0) target = $region5
    $region4: #{tpu_custom_call.1} parent=1 // pred_region
      %s26 = ssub.s32 128, 128
      %27 = vsyncadd [#allocation6], %s26
      %s29 = sshll.u32 [#allocation5], 4
      %s30 = int_to_ptr.vmem [resolvable:$true] %s29
      %32 = dma.hbm_to_vmem [thread:$0]  %s1, 128, %s30, [#allocation6]
    $region5: #{tpu_custom_call.1} parent=1 // pred_fallthru
      _
    // Predicated region
    $region6: #{tpu_custom_call.1} parent=1 // pred_check
      _
    $region7: #{tpu_custom_call.1} parent=1 // pred_check_branch
      %34 = sbr.rel (0) target = $region9
    $region8: #{tpu_custom_call.1} parent=1 // pred_region
      _
    $region9: #{tpu_custom_call.1} parent=1 // pred_fallthru
      _
    // Predicated region
    $region10: #{tpu_custom_call.1} parent=1 // pred_check
      _
    $region11: #{tpu_custom_call.1} parent=1 // pred_check_branch
      %36 = sbr.rel (0) target = $region13
    $region12: #{tpu_custom_call.1} parent=1 // pred_region
      %s38 = ssub.s32 16, 16
      %39 = vsyncadd [#allocation9], %s38
      %s41 = sshll.u32 [#allocation8], 4
      %s42 = int_to_ptr.vmem [resolvable:$true] %s41
      %44 = dma.hbm_to_vmem [thread:$0]  %s3, 16, %s42, [#allocation9]
    $region13: #{tpu_custom_call.1} parent=1 // pred_fallthru
      _
    // Predicated region
    $region14: #{tpu_custom_call.1} parent=1 // pred_check
      _
    $region15: #{tpu_custom_call.1} parent=1 // pred_check_branch
      %46 = sbr.rel (0) target = $region17
    $region16: #{tpu_custom_call.1} parent=1 // pred_region
      _
    $region17: #{tpu_custom_call.1} parent=1 // pred_fallthru
      _
    // Predicated region
    $region18: #{tpu_custom_call.1} parent=1 // pred_check
      _
    $region19: #{tpu_custom_call.1} parent=1 // pred_check_branch
      %48 = sbr.rel (0) target = $region21
    $region20: #{tpu_custom_call.1} parent=1 // pred_region
      %s50 = ssub.s32 16, 16
      %51 = vsyncadd [#allocation9], %s50
      %s53 = sshll.u32 [#allocation10], 4
      %s54 = int_to_ptr.vmem [resolvable:$true] %s53
      %56 = dma.hbm_to_vmem [thread:$0]  %s5, 16, %s54, [#allocation9]
    $region21: #{tpu_custom_call.1} parent=1 // pred_fallthru
      _
    // Predicated region
    $region22: #{tpu_custom_call.1} parent=1 // pred_check
      _
    $region23: #{tpu_custom_call.1} parent=1 // pred_check_branch
      %58 = sbr.rel (0) target = $region25
    $region24: #{tpu_custom_call.1} parent=1 // pred_region
      %s60 = ssub.s32 1024, 1024
      %61 = vsyncadd [#allocation12], %s60
      %s62 = sshll.u32 [#allocation11], 4
      %s63 = int_to_ptr.vmem [resolvable:$true] %s62
      %68 = dma.hbm_to_vmem [thread:$0]  %s6, 1024, %s63, [#allocation12], 64, 64, 4
    $region25: #{tpu_custom_call.1} parent=1 // pred_fallthru
      _
    // Predicated region
    $region26: #{tpu_custom_call.1} parent=1 // pred_check
      _
    $region27: #{tpu_custom_call.1} parent=1 // pred_check_branch
      %70 = sbr.rel (0) target = $region29
    $region28: #{tpu_custom_call.1} parent=1 // pred_region
      %s72 = ssub.s32 16, 16
      %73 = vsyncadd [#allocation12], %s72
      %s75 = sshll.u32 [#allocation13], 4
      %s76 = int_to_ptr.vmem [resolvable:$true] %s75
      %78 = dma.hbm_to_vmem [thread:$0]  %s7, 16, %s76, [#allocation12]
    $region29: #{tpu_custom_call.1} parent=1 // pred_fallthru
      _
    // Predicated region
    $region30: #{tpu_custom_call.1} parent=1 // pred_check
      _
    $region31: #{tpu_custom_call.1} parent=1 // pred_check_branch
      %80 = sbr.rel (0) target = $region33
    $region32: #{tpu_custom_call.1} parent=1 // pred_region
      _
    $region33: #{tpu_custom_call.1} parent=1 // pred_fallthru
      _
    // Predicated region
    $region34: #{tpu_custom_call.1} parent=1 // pred_check
      _
    $region35: #{tpu_custom_call.1} parent=1 // pred_check_branch
      %82 = sbr.rel (0) target = $region37
    $region36: #{tpu_custom_call.1} parent=1 // pred_region
      %s84 = ssub.s32 16, 16
      %85 = vsyncadd [#allocation15], %s84
      %s87 = sshll.u32 [#allocation14], 4
      %s88 = int_to_ptr.vmem [resolvable:$true] %s87
      %90 = dma.hbm_to_vmem [thread:$0]  %s9, 16, %s88, [#allocation15]
    $region37: #{tpu_custom_call.1} parent=1 // pred_fallthru
      _
    // Predicated region
    $region38: #{tpu_custom_call.1} parent=1 // pred_check
      _
    $region39: #{tpu_custom_call.1} parent=1 // pred_check_branch
      %92 = sbr.rel (0) target = $region41
    $region40: #{tpu_custom_call.1} parent=1 // pred_region
      _
    $region41: #{tpu_custom_call.1} parent=1 // pred_fallthru
      _
    // Predicated region
    $region42: #{tpu_custom_call.1} parent=1 // pred_check
      _
    $region43: #{tpu_custom_call.1} parent=1 // pred_check_branch
      %94 = sbr.rel (0) target = $region45
    $region44: #{tpu_custom_call.1} parent=1 // pred_region
      _
    $region45: #{tpu_custom_call.1} parent=1 // pred_fallthru
      _
    // Predicated region
    $region46: #{tpu_custom_call.1} parent=1 // pred_check
      _
    $region47: #{tpu_custom_call.1} parent=1 // pred_check_branch
      %96 = sbr.rel (0) target = $region49
    $region48: #{tpu_custom_call.1} parent=1 // pred_region
      %97 = dma.done [#allocation6], 128
    $region49: #{tpu_custom_call.1} parent=1 // pred_fallthru
      _
    // Predicated region
    $region50: #{tpu_custom_call.1} parent=1 // pred_check
      _
    $region51: #{tpu_custom_call.1} parent=1 // pred_check_branch
      %99 = sbr.rel (0) target = $region53
    $region52: #{tpu_custom_call.1} parent=1 // pred_region
      %100 = dma.done [#allocation9], 16
    $region53: #{tpu_custom_call.1} parent=1 // pred_fallthru
      _
    // Predicated region
    $region54: #{tpu_custom_call.1} parent=1 // pred_check
      _
    $region55: #{tpu_custom_call.1} parent=1 // pred_check_branch
      %102 = sbr.rel (0) target = $region57
    $region56: #{tpu_custom_call.1} parent=1 // pred_region
      %103 = dma.done [#allocation9], 16
    $region57: #{tpu_custom_call.1} parent=1 // pred_fallthru
      _
    // Predicated region
    $region58: #{tpu_custom_call.1} parent=1 // pred_check
      _
    $region59: #{tpu_custom_call.1} parent=1 // pred_check_branch
      %105 = sbr.rel (0) target = $region61
    $region60: #{tpu_custom_call.1} parent=1 // pred_region
      %106 = dma.done [#allocation12], 1024
    $region61: #{tpu_custom_call.1} parent=1 // pred_fallthru
      _
    // Predicated region
    $region62: #{tpu_custom_call.1} parent=1 // pred_check
      _
    $region63: #{tpu_custom_call.1} parent=1 // pred_check_branch
      %108 = sbr.rel (0) target = $region65
    $region64: #{tpu_custom_call.1} parent=1 // pred_region
      %109 = dma.done [#allocation12], 16
    $region65: #{tpu_custom_call.1} parent=1 // pred_fallthru
      _
    // Predicated region
    $region66: #{tpu_custom_call.1} parent=1 // pred_check
      _
    $region67: #{tpu_custom_call.1} parent=1 // pred_check_branch
      %111 = sbr.rel (0) target = $region69
    $region68: #{tpu_custom_call.1} parent=1 // pred_region
      %112 = dma.done [#allocation15], 16
    $region69: #{tpu_custom_call.1} parent=1 // pred_fallthru
      _
    %v114 = vld [vmem:[#allocation5] sm:$0xff]
    %v115 = vpack.c.bf16 %v114, %v114
    %v116 = vld [vmem:[%s2] sm:$0xf]
    %v117 = vld [vmem:[%s2 + $0x4] sm:$0xf]
    %v118 = vld [vmem:[%s2 + $0x8] sm:$0xf]
    %v119 = vld [vmem:[%s2 + $0xc] sm:$0xf]
    %v120 = vld [vmem:[#allocation8] sm:$0x1]
    %v122 = vlaneseq
    %v123 = vshrl.u32 %v122, 7
    %v124 = vsub.s32 0, %v123
    %v125 = vrot.slane %v120, %v124
    %v131 = vunpack.c.l.b16 %v116
    %v132 = vunpack.c.l.b16 %v117
    %v133 = vunpack.c.l.b16 %v118
    %v134 = vunpack.c.l.b16 %v119
    %v135 = vpack.c.b16 %v132, %v131
    %v136 = vpack.c.b16 %v134, %v133
    %vm139 = vcmask 261120
    %v141 = vsel %vm139, %v115, 0
    %143 = vmatprep.subr.bf16.mxu0 0
    %144 = vmatpush1.bf16.msra.mxu0 0
    %145 = vmatprep.subr.bf16.mxu0 0
    %146 = vmatpush1.bf16.msra.mxu0 0
    %147 = vmatprep.subr.bf16.mxu0 0
    %148 = vmatpush1.bf16.msra.mxu0 0
    %149 = vmatprep.subr.bf16.mxu0 0
    %150 = vmatpush1.bf16.msra.mxu0 0
    %151 = vmatprep.subr.bf16.mxu0 0
    %152 = vmatpush1.bf16.msra.mxu0 0
    %153 = vmatprep.subr.bf16.mxu0 0
    %154 = vmatpush1.bf16.msra.mxu0 0
    %155 = vmatprep.subr.bf16.mxu0 0
    %156 = vmatpush1.bf16.msra.mxu0 %v136
    %157 = vmatprep.subr.bf16.mxu0 0
    %158 = vmatpush1.bf16.msra.mxu0 %v135
    %159 = vmatprep.subr.bf16.mxu0 0
    %160 = vmatpush2.bf16.msra.mxu0 0
    %161 = vmatprep.subr.bf16.mxu0 0
    %162 = vmatpush2.bf16.msra.mxu0 0
    %163 = vmatprep.subr.bf16.mxu0 0
    %164 = vmatpush2.bf16.msra.mxu0 0
    %165 = vmatprep.subr.bf16.mxu0 0
    %166 = vmatpush2.bf16.msra.mxu0 0
    %167 = vmatprep.subr.bf16.mxu0 0
    %168 = vmatpush2.bf16.msra.mxu0 0
    %169 = vmatprep.subr.bf16.mxu0 0
    %170 = vmatpush2.bf16.msra.mxu0 0
    %171 = vmatprep.subr.bf16.mxu0 0
    %172 = vmatpush2.bf16.msra.mxu0 0
    %173 = vmatprep.subr.bf16.mxu0 0
    %174 = vmatpush2.bf16.msra.mxu0 0
    %175 = vmatprep.mubr.bf16.mxu0 0
    %176 = vmatmul.mubr.bf16.gmra.mxu0 %v141
    %v177 = vpop.f32.mrf.mxu0
    %v178 = vadd.f32 %v125, %v177
    %v179 = vpop.f32.mrf.mxu0
    %v180 = vpop.f32.mrf.mxu0
    %v181 = vpop.f32.mrf.mxu0
    %182 = vdwg.mxu0
    %v183 = vtanh.pop %v178
    %v184 = vpack.c.bf16 %v183, %v183
    %v185 = vld [vmem:[%s4] sm:$0xf]
    %v186 = vld [vmem:[%s4 + $0x4] sm:$0xf]
    %v187 = vld [vmem:[%s4 + $0x8] sm:$0xf]
    %v188 = vld [vmem:[%s4 + $0xc] sm:$0xf]
    %v189 = vld [vmem:[%s4 + $0x10] sm:$0xf]
    %v190 = vld [vmem:[%s4 + $0x14] sm:$0xf]
    %v191 = vld [vmem:[%s4 + $0x18] sm:$0xf]
    %v192 = vld [vmem:[%s4 + $0x1c] sm:$0xf]
    %v193 = vld [vmem:[%s4 + $0x20] sm:$0xf]
    %v194 = vld [vmem:[%s4 + $0x24] sm:$0xf]
    %v195 = vld [vmem:[%s4 + $0x28] sm:$0xf]
    %v196 = vld [vmem:[%s4 + $0x2c] sm:$0xf]
    %v197 = vld [vmem:[%s4 + $0x30] sm:$0xf]
    %v198 = vld [vmem:[%s4 + $0x34] sm:$0xf]
    %v199 = vld [vmem:[%s4 + $0x38] sm:$0xf]
    %v200 = vld [vmem:[%s4 + $0x3c] sm:$0xf]
    %v201 = vld [vmem:[#allocation10] sm:$0x1]
    %v203 = vlaneseq
    %v204 = vshrl.u32 %v203, 7
    %v205 = vsub.s32 0, %v204
    %v206 = vrot.slane %v201, %v205
    %v224 = vunpack.c.l.b16 %v185
    %v225 = vunpack.c.l.b16 %v186
    %v226 = vunpack.c.l.b16 %v187
    %v227 = vunpack.c.l.b16 %v188
    %v228 = vunpack.c.l.b16 %v189
    %v229 = vunpack.c.l.b16 %v190
    %v230 = vunpack.c.l.b16 %v191
    %v231 = vunpack.c.l.b16 %v192
    %v232 = vunpack.c.l.b16 %v193
    %v233 = vunpack.c.l.b16 %v194
    %v234 = vunpack.c.l.b16 %v195
    %v235 = vunpack.c.l.b16 %v196
    %v236 = vunpack.c.l.b16 %v197
    %v237 = vunpack.c.l.b16 %v198
    %v238 = vunpack.c.l.b16 %v199
    %v239 = vunpack.c.l.b16 %v200
    %v240 = vpack.c.b16 %v225, %v224
    %v241 = vpack.c.b16 %v227, %v226
    %v242 = vpack.c.b16 %v229, %v228
    %v243 = vpack.c.b16 %v231, %v230
    %v244 = vpack.c.b16 %v233, %v232
    %v245 = vpack.c.b16 %v235, %v234
    %v246 = vpack.c.b16 %v237, %v236
    %v247 = vpack.c.b16 %v239, %v238
    %256 = vmatprep.subr.bf16.mxu0 0
    %257 = vmatpush1.bf16.msra.mxu0 %v247
    %258 = vmatprep.subr.bf16.mxu0 0
    %259 = vmatpush1.bf16.msra.mxu0 %v246
    %260 = vmatprep.subr.bf16.mxu0 0
    %261 = vmatpush1.bf16.msra.mxu0 %v245
    %262 = vmatprep.subr.bf16.mxu0 0
    %263 = vmatpush1.bf16.msra.mxu0 %v244
    %264 = vmatprep.subr.bf16.mxu0 0
    %265 = vmatpush1.bf16.msra.mxu0 %v243
    %266 = vmatprep.subr.bf16.mxu0 0
    %267 = vmatpush1.bf16.msra.mxu0 %v242
    %268 = vmatprep.subr.bf16.mxu0 0
    %269 = vmatpush1.bf16.msra.mxu0 %v241
    %270 = vmatprep.subr.bf16.mxu0 0
    %271 = vmatpush1.bf16.msra.mxu0 %v240
    %272 = vmatprep.subr.bf16.mxu0 0
    %273 = vmatpush2.bf16.msra.mxu0 0
    %274 = vmatprep.subr.bf16.mxu0 0
    %275 = vmatpush2.bf16.msra.mxu0 0
    %276 = vmatprep.subr.bf16.mxu0 0
    %277 = vmatpush2.bf16.msra.mxu0 0
    %278 = vmatprep.subr.bf16.mxu0 0
    %279 = vmatpush2.bf16.msra.mxu0 0
    %280 = vmatprep.subr.bf16.mxu0 0
    %281 = vmatpush2.bf16.msra.mxu0 0
    %282 = vmatprep.subr.bf16.mxu0 0
    %283 = vmatpush2.bf16.msra.mxu0 0
    %284 = vmatprep.subr.bf16.mxu0 0
    %285 = vmatpush2.bf16.msra.mxu0 0
    %286 = vmatprep.subr.bf16.mxu0 0
    %287 = vmatpush2.bf16.msra.mxu0 0
    %288 = vmatprep.mubr.bf16.mxu0 0
    %289 = vmatmul.mubr.bf16.gmra.mxu0 %v184
    %v290 = vpop.f32.mrf.mxu0
    %v291 = vadd.f32 %v206, %v290
    %v292 = vpop.f32.mrf.mxu0
    %v293 = vpop.f32.mrf.mxu0
    %v294 = vpop.f32.mrf.mxu0
    %295 = vdwg.mxu0
    %v296 = vtanh.pop %v291
    %v297 = vpack.c.bf16 %v296, %v296
    %v298 = vld [vmem:[#allocation11] sm:$0xf]
    %v299 = vld [vmem:[#allocation11 + $0x4] sm:$0xf]
    %v300 = vld [vmem:[#allocation11 + $0x8] sm:$0xf]
    %v301 = vld [vmem:[#allocation11 + $0xc] sm:$0xf]
    %v302 = vld [vmem:[#allocation11 + $0x10] sm:$0xf]
    %v303 = vld [vmem:[#allocation11 + $0x14] sm:$0xf]
    %v304 = vld [vmem:[#allocation11 + $0x18] sm:$0xf]
    %v305 = vld [vmem:[#allocation11 + $0x1c] sm:$0xf]
    %v306 = vld [vmem:[#allocation11 + $0x20] sm:$0xf]
    %v307 = vld [vmem:[#allocation11 + $0x24] sm:$0xf]
    %v308 = vld [vmem:[#allocation11 + $0x28] sm:$0xf]
    %v309 = vld [vmem:[#allocation11 + $0x2c] sm:$0xf]
    %v310 = vld [vmem:[#allocation11 + $0x30] sm:$0xf]
    %v311 = vld [vmem:[#allocation11 + $0x34] sm:$0xf]
    %v312 = vld [vmem:[#allocation11 + $0x38] sm:$0xf]
    %v313 = vld [vmem:[#allocation11 + $0x3c] sm:$0xf]
    %v314 = vld [vmem:[#allocation13] sm:$0x1]
    %v316 = vlaneseq
    %v317 = vshrl.u32 %v316, 7
    %v318 = vsub.s32 0, %v317
    %v319 = vrot.slane %v314, %v318
    %v337 = vunpack.c.l.b16 %v298
    %v338 = vunpack.c.l.b16 %v299
    %v339 = vunpack.c.l.b16 %v300
    %v340 = vunpack.c.l.b16 %v301
    %v341 = vunpack.c.l.b16 %v302
    %v342 = vunpack.c.l.b16 %v303
    %v343 = vunpack.c.l.b16 %v304
    %v344 = vunpack.c.l.b16 %v305
    %v345 = vunpack.c.l.b16 %v306
    %v346 = vunpack.c.l.b16 %v307
    %v347 = vunpack.c.l.b16 %v308
    %v348 = vunpack.c.l.b16 %v309
    %v349 = vunpack.c.l.b16 %v310
    %v350 = vunpack.c.l.b16 %v311
    %v351 = vunpack.c.l.b16 %v312
    %v352 = vunpack.c.l.b16 %v313
    %v353 = vpack.c.b16 %v338, %v337
    %v354 = vpack.c.b16 %v340, %v339
    %v355 = vpack.c.b16 %v342, %v341
    %v356 = vpack.c.b16 %v344, %v343
    %v357 = vpack.c.b16 %v346, %v345
    %v358 = vpack.c.b16 %v348, %v347
    %v359 = vpack.c.b16 %v350, %v349
    %v360 = vpack.c.b16 %v352, %v351
    %369 = vmatprep.subr.bf16.mxu0 0
    %370 = vmatpush1.bf16.msra.mxu0 %v360
    %371 = vmatprep.subr.bf16.mxu0 0
    %372 = vmatpush1.bf16.msra.mxu0 %v359
    %373 = vmatprep.subr.bf16.mxu0 0
    %374 = vmatpush1.bf16.msra.mxu0 %v358
    %375 = vmatprep.subr.bf16.mxu0 0
    %376 = vmatpush1.bf16.msra.mxu0 %v357
    %377 = vmatprep.subr.bf16.mxu0 0
    %378 = vmatpush1.bf16.msra.mxu0 %v356
    %379 = vmatprep.subr.bf16.mxu0 0
    %380 = vmatpush1.bf16.msra.mxu0 %v355
    %381 = vmatprep.subr.bf16.mxu0 0
    %382 = vmatpush1.bf16.msra.mxu0 %v354
    %383 = vmatprep.subr.bf16.mxu0 0
    %384 = vmatpush1.bf16.msra.mxu0 %v353
    %385 = vmatprep.subr.bf16.mxu0 0
    %386 = vmatpush2.bf16.msra.mxu0 0
    %387 = vmatprep.subr.bf16.mxu0 0
    %388 = vmatpush2.bf16.msra.mxu0 0
    %389 = vmatprep.subr.bf16.mxu0 0
    %390 = vmatpush2.bf16.msra.mxu0 0
    %391 = vmatprep.subr.bf16.mxu0 0
    %392 = vmatpush2.bf16.msra.mxu0 0
    %393 = vmatprep.subr.bf16.mxu0 0
    %394 = vmatpush2.bf16.msra.mxu0 0
    %395 = vmatprep.subr.bf16.mxu0 0
    %396 = vmatpush2.bf16.msra.mxu0 0
    %397 = vmatprep.subr.bf16.mxu0 0
    %398 = vmatpush2.bf16.msra.mxu0 0
    %399 = vmatprep.subr.bf16.mxu0 0
    %400 = vmatpush2.bf16.msra.mxu0 0
    %401 = vmatprep.mubr.bf16.mxu0 0
    %402 = vmatmul.mubr.bf16.gmra.mxu0 %v297
    %v403 = vpop.f32.mrf.mxu0
    %v404 = vadd.f32 %v319, %v403
    %v405 = vpop.f32.mrf.mxu0
    %v406 = vpop.f32.mrf.mxu0
    %v407 = vpop.f32.mrf.mxu0
    %408 = vdwg.mxu0
    %v409 = vtanh.pop %v404
    %v410 = vpack.c.bf16 %v409, %v409
    %v411 = vld [vmem:[%s8] sm:$0xf]
    %v412 = vld [vmem:[%s8 + $0x4] sm:$0xf]
    %v413 = vld [vmem:[%s8 + $0x8] sm:$0xf]
    %v414 = vld [vmem:[%s8 + $0xc] sm:$0xf]
    %v415 = vld [vmem:[%s8 + $0x10] sm:$0xf]
    %v416 = vld [vmem:[%s8 + $0x14] sm:$0xf]
    %v417 = vld [vmem:[%s8 + $0x18] sm:$0xf]
    %v418 = vld [vmem:[%s8 + $0x1c] sm:$0xf]
    %v419 = vld [vmem:[%s8 + $0x20] sm:$0xf]
    %v420 = vld [vmem:[%s8 + $0x24] sm:$0xf]
    %v421 = vld [vmem:[%s8 + $0x28] sm:$0xf]
    %v422 = vld [vmem:[%s8 + $0x2c] sm:$0xf]
    %v423 = vld [vmem:[%s8 + $0x30] sm:$0xf]
    %v424 = vld [vmem:[%s8 + $0x34] sm:$0xf]
    %v425 = vld [vmem:[%s8 + $0x38] sm:$0xf]
    %v426 = vld [vmem:[%s8 + $0x3c] sm:$0xf]
    %v427 = vld [vmem:[#allocation14] sm:$0x1]
    %v429 = vlaneseq
    %v430 = vshrl.u32 %v429, 7
    %v431 = vsub.s32 0, %v430
    %v432 = vrot.slane %v427, %v431
    %v450 = vunpack.c.l.b16 %v411
    %v451 = vunpack.c.l.b16 %v412
    %v452 = vunpack.c.l.b16 %v413
    %v453 = vunpack.c.l.b16 %v414
    %v454 = vunpack.c.l.b16 %v415
    %v455 = vunpack.c.l.b16 %v416
    %v456 = vunpack.c.l.b16 %v417
    %v457 = vunpack.c.l.b16 %v418
    %v458 = vunpack.c.l.b16 %v419
    %v459 = vunpack.c.l.b16 %v420
    %v460 = vunpack.c.l.b16 %v421
    %v461 = vunpack.c.l.b16 %v422
    %v462 = vunpack.c.l.b16 %v423
    %v463 = vunpack.c.l.b16 %v424
    %v464 = vunpack.c.l.b16 %v425
    %v465 = vunpack.c.l.b16 %v426
    %v466 = vpack.c.b16 %v451, %v450
    %v467 = vpack.c.b16 %v453, %v452
    %v468 = vpack.c.b16 %v455, %v454
    %v469 = vpack.c.b16 %v457, %v456
    %v470 = vpack.c.b16 %v459, %v458
    %v471 = vpack.c.b16 %v461, %v460
    %v472 = vpack.c.b16 %v463, %v462
    %v473 = vpack.c.b16 %v465, %v464
    %482 = vmatprep.subr.bf16.mxu0 0
    %483 = vmatpush1.bf16.msra.mxu0 %v473
    %484 = vmatprep.subr.bf16.mxu0 0
    %485 = vmatpush1.bf16.msra.mxu0 %v472
    %486 = vmatprep.subr.bf16.mxu0 0
    %487 = vmatpush1.bf16.msra.mxu0 %v471
    %488 = vmatprep.subr.bf16.mxu0 0
    %489 = vmatpush1.bf16.msra.mxu0 %v470
    %490 = vmatprep.subr.bf16.mxu0 0
    %491 = vmatpush1.bf16.msra.mxu0 %v469
    %492 = vmatprep.subr.bf16.mxu0 0
    %493 = vmatpush1.bf16.msra.mxu0 %v468
    %494 = vmatprep.subr.bf16.mxu0 0
    %495 = vmatpush1.bf16.msra.mxu0 %v467
    %496 = vmatprep.subr.bf16.mxu0 0
    %497 = vmatpush1.bf16.msra.mxu0 %v466
    %498 = vmatprep.subr.bf16.mxu0 0
    %499 = vmatpush2.bf16.msra.mxu0 0
    %500 = vmatprep.subr.bf16.mxu0 0
    %501 = vmatpush2.bf16.msra.mxu0 0
    %502 = vmatprep.subr.bf16.mxu0 0
    %503 = vmatpush2.bf16.msra.mxu0 0
    %504 = vmatprep.subr.bf16.mxu0 0
    %505 = vmatpush2.bf16.msra.mxu0 0
    %506 = vmatprep.subr.bf16.mxu0 0
    %507 = vmatpush2.bf16.msra.mxu0 0
    %508 = vmatprep.subr.bf16.mxu0 0
    %509 = vmatpush2.bf16.msra.mxu0 0
    %510 = vmatprep.subr.bf16.mxu0 0
    %511 = vmatpush2.bf16.msra.mxu0 0
    %512 = vmatprep.subr.bf16.mxu0 0
    %513 = vmatpush2.bf16.msra.mxu0 0
    %514 = vmatprep.mubr.bf16.mxu0 0
    %515 = vmatmul.mubr.bf16.gmra.mxu0 %v410
    %v516 = vpop.f32.mrf.mxu0
    %v517 = vadd.f32 %v432, %v516
    %v518 = vpop.f32.mrf.mxu0
    %v519 = vpop.f32.mrf.mxu0
    %v520 = vpop.f32.mrf.mxu0
    %521 = vdwg.mxu0
    %v522 = vlaneseq
    %v523 = vand.u32 %v522, 127
    %vm524 = vcmask 64512
    %v525 = vsel %vm524, %v517, -inf
    %526 = vmax.xlane.f32.xlu0 %v525
    %v527 = vpop.xlane.xlu0 %526
    %v528 = vsub.f32 %v517, %v527
    %v529 = vmul.f32 %v528, 1.442695
    %v530 = vpow.pop %v529
    %v531 = vsel %vm524, %v530, 0.0
    %532 = vadd.xlane.f32.xlu0 %v531
    %v533 = vpop.xlane.xlu0 %532
    %v534 = vlog2.pop %v533
    %v535 = vmul.f32 %v534, 0.6931472
    %v536 = vadd.f32 %v527, %v535
    %v537 = vsub.f32 %v517, %v536
    %v538 = vmul.f32 %v537, 1.442695
    %v539 = vpow.pop %v538
    %s540 = sld [smem:[#allocation4]]
    %p541 = scmp.ne.s32.totalorder %s540, 0
    // Predicated region
    $region70: #{tpu_custom_call.1} parent=1 // pred_check
      %p542 = pneg %p541
    $region71: #{tpu_custom_call.1} parent=1 // pred_check_branch
      %544 = sbr.rel (%p542) target = $region73
    $region72: #{tpu_custom_call.1} parent=1 // pred_region
      %v545 = vld [vmem:[%s10] sm:$0xff]
      %vm546 = vcmask 7168
      %547 = vst.msk [vmem:[#allocation2] sm:$0xff] %vm546, %v545
    $region73: #{tpu_custom_call.1} parent=1 // pred_fallthru
      _
    %p548 = scmp.eq.s32.totalorder %s540, 0
    // Predicated region
    $region74: #{tpu_custom_call.1} parent=1 // pred_check
      %p549 = pneg %p548
    $region75: #{tpu_custom_call.1} parent=1 // pred_check_branch
      %551 = sbr.rel (%p549) target = $region77
    $region76: #{tpu_custom_call.1} parent=1 // pred_region
      %v552 = vld [vmem:[%s11] sm:$0xff]
      %v553 = vadd.f32 %v517, %v552
      %v554 = vsel %vm524, %v553, -inf
      %555 = vmax.xlane.f32.xlu0 %v554
      %v556 = vpop.xlane.xlu0 %555
      %vm557 = vcmp.eq.f32.partialorder %v553, %v556
      %v558 = vsel %vm557, %v523, 8
      %v559 = vsel %vm524, %v558, 2147483647
      %v560 = vand.u32 %v559, 65535
      %v561 = vshra.s32 %v559, 16
      %v562 = vcvt.s32.f32 %v560
      %v563 = vcvt.s32.f32 %v561
      %564 = vmin.xlane.f32.xlu0 %v563
      %v565 = vpop.xlane.xlu0 %564
      %vm566 = vcmp.eq.f32.partialorder %v563, %v565
      %v567 = vsel %vm566, %v562, inf
      %568 = vmin.xlane.f32.xlu0 %v567
      %v569 = vpop.xlane.xlu0 %568
      %v570 = vcvt.f32.s32 %v569
      %v571 = vcvt.f32.s32 %v565
      %v572 = vshll.u32 %v571, 16
      %v573 = vadd.s32 %v572, %v570
      %vm574 = vcmask 7168
      %575 = vst.msk [vmem:[#allocation2] sm:$0xff] %vm574, %v573
    $region77: #{tpu_custom_call.1} parent=1 // pred_fallthru
      _
    %v576 = vld [vmem:[#allocation2] sm:$0xff]
    %577 = vset.pattern.permute.xlu0 0
    %578 = vperm.xlu0 %577, %v576
    %v579 = vpop.permute.xlu0 %578
    %vm580 = vcmp.eq.s32.totalorder %v523, %v579
    %v581 = vsel %vm580, %v517, 0.0
    %v582 = vsel %vm524, %v581, 0.0
    %583 = vadd.xlane.f32.xlu0 %v582
    %v584 = vpop.xlane.xlu0 %583
    %v585 = vsub.f32 %v536, %v584
    %v586 = vmul.f32 %v539, %v517
    %v587 = vsel %vm524, %v586, 0.0
    %588 = vadd.xlane.f32.xlu0 %v587
    %v589 = vpop.xlane.xlu0 %588
    %v590 = vsub.f32 %v536, %v589
    %vm591 = vcmp.eq.s32.totalorder %v523, 0
    %593 = vset.pattern.permute.xlu0 8
    %594 = vperm.xlu0 %593, %v517
    %v595 = vpop.permute.xlu0 %594
    %v597 = vsel %vm591, %v595, 0.0
    %vm598 = vcmp.eq.s32.totalorder %v523, 1
    %v599 = vsel %vm598, %v585, 0.0
    %v600 = vadd.f32 %v597, %v599
    %vm601 = vcmp.eq.s32.totalorder %v523, 2
    %v602 = vsel %vm601, %v590, 0.0
    %v603 = vadd.f32 %v600, %v602
    %vm604 = vcmp.eq.s32.totalorder %v523, 3
    %v605 = vcvt.s32.f32 %v576
    %607 = vset.pattern.permute.xlu0 0
    %608 = vperm.xlu0 %607, %v605
    %v609 = vpop.permute.xlu0 %608
    %v611 = vsel %vm604, %v609, 0.0
    %v612 = vadd.f32 %v603, %v611
    %613 = vst [vmem:[#allocation16] sm:$0xff] %v612
    // Predicated region
    $region78: #{tpu_custom_call.1} parent=1 // pred_check
      _
    $region79: #{tpu_custom_call.1} parent=1 // pred_check_branch
      %615 = sbr.rel (0) target = $region81
    $region80: #{tpu_custom_call.1} parent=1 // pred_region
      %s617 = ssub.s32 128, 128
      %618 = vsyncadd [#allocation7], %s617
      %s620 = sshll.u32 [#allocation16], 4
      %s621 = int_to_ptr.vmem [resolvable:$true] %s620
      %623 = dma.vmem_to_hbm [thread:$0]  %s621, 128, %s12, [#allocation7]
    $region81: #{tpu_custom_call.1} parent=1 // pred_fallthru
      _
    // Predicated region
    $region82: #{tpu_custom_call.1} parent=1 // pred_check
      _
    $region83: #{tpu_custom_call.1} parent=1 // pred_check_branch
      %625 = sbr.rel (0) target = $region85
    $region84: #{tpu_custom_call.1} parent=1 // pred_region
      %626 = dma.done [#allocation7], 128
    $region85: #{tpu_custom_call.1} parent=1 // pred_fallthru
      _
    %627 = vsyncpa [#allocation6], 1
    %628 = vsyncpa [#allocation9], 1
    %629 = vsyncpa [#allocation12], 1
    %630 = vsyncpa [#allocation15], 1
    %631 = vsyncpa [#allocation7], 1

</llo_original>
